<compile_context>
chip_gen: v7x
topology: tpu7x:2x2x1
jax: 0.10.0
libtpu: 0.0.40
codegen_flags: <defaults>
</compile_context>

<pallas_src>
import functools

import jax
import jax.numpy as jnp
from jax.experimental import pallas as pl
from jax.experimental.pallas import tpu as pltpu

MIN_NORM = 1e-15
ARTANH_EPS = 1e-7          # f32-scale clip eps (1.0 - 1e-15 == 1.0 in f32)
PROJ_EPS = 4e-3            # float32 eps used by HGCN PoincareBall.proj


def _round_up(a, b):
    return ((a + b - 1) // b) * b


def _pick_tile(total, cap, align):
    """Largest multiple of `align` that divides `total` and is <= cap."""
    t = min(cap, total)
    t -= t % align
    t = max(t, align)
    while total % t:
        t -= align
    return t


def _vmem_budget():
    """Per-generation scoped-VMEM budget: ~48 MiB on v7x, up to 96 MiB on v5e/v6e."""
    try:
        info = pltpu.get_tpu_info()
        cap = int(getattr(info, "vmem_capacity_bytes", 0)) or (128 * 1024 * 1024)
        return min((cap * 3) // 4, 96 * 1024 * 1024)
    except Exception:
        return 32 * 1024 * 1024


def _node_plan(n, tm_cap=512, tk_cap=1024):
    n_pad = _round_up(n, 128)
    tm = _pick_tile(n_pad, tm_cap, 8)       # sublane dim: multiple of 8
    tk = _pick_tile(n_pad, tk_cap, 128)     # lane dim of adj tile: multiple of 128
    # Give v7x's two TensorCores at least two i-tiles on the "parallel" axis.
    if n_pad // tm < 2 and n_pad >= 256:
        tm = _pick_tile(n_pad, n_pad // 2, 8)
    return n_pad, tm, tk


# ----------------------------------------------------------------------------
# expmap0 + proj helper (shared by the fused spmm epilogue and the standalone
# kernel).  Divides go through the EUP approx reciprocal.
# ----------------------------------------------------------------------------
def _expmap0_proj(u, c):
    sqrt_c = jnp.float32(c) ** 0.5
    u_norm = jnp.maximum(jnp.sqrt(jnp.sum(u * u, axis=-1, keepdims=True)), MIN_NORM)
    gamma = jnp.tanh(sqrt_c * u_norm) * u * pl.reciprocal(sqrt_c * u_norm, approx=True)
    g_norm = jnp.maximum(jnp.sqrt(jnp.sum(gamma * gamma, axis=-1, keepdims=True)),
                         MIN_NORM)
    maxnorm = (1.0 - PROJ_EPS) / sqrt_c
    clipped = gamma * (pl.reciprocal(g_norm, approx=True) * maxnorm)
    return jnp.where(g_norm > maxnorm, clipped, gamma)


# ----------------------------------------------------------------------------
# Kernel 1: logmap0 (elementwise + per-row L2 norm).
# ----------------------------------------------------------------------------
def _logmap0_kernel(x_ref, o_ref, *, c):
    x = x_ref[...].astype(jnp.float32)
    sqrt_c = jnp.float32(c) ** 0.5
    norm = jnp.maximum(jnp.sqrt(jnp.sum(x * x, axis=-1, keepdims=True)), MIN_NORM)
    z = jnp.clip(sqrt_c * norm, -1.0 + ARTANH_EPS, 1.0 - ARTANH_EPS)
    artanh = 0.5 * (jnp.log1p(z) - jnp.log1p(-z))
    scale = artanh * pl.reciprocal(sqrt_c * norm, approx=True)
    o_ref[...] = (x * scale).astype(o_ref.dtype)


# ----------------------------------------------------------------------------
# Kernel 2: standalone expmap0 + proj (only used when num_gcn_layers == 0).
# ----------------------------------------------------------------------------
def _expmap0_proj_kernel(u_ref, o_ref, *, c):
    u = u_ref[...].astype(jnp.float32)
    o_ref[...] = _expmap0_proj(u, c).astype(o_ref.dtype)


def _rowwise_call(kernel, x, *, tm, out_dtype, vmem_limit):
    n, d = x.shape
    assert n % tm == 0 and d % 128 == 0
    return pl.pallas_call(
        kernel,
        out_shape=jax.ShapeDtypeStruct((n, d), out_dtype),
        grid_spec=pltpu.PrefetchScalarGridSpec(
            num_scalar_prefetch=0,
            grid=(n // tm,),
            in_specs=[pl.BlockSpec((tm, d), lambda i: (i, 0))],
            out_specs=pl.BlockSpec((tm, d), lambda i: (i, 0)),
        ),
        compiler_params=pltpu.CompilerParams(
            dimension_semantics=("parallel",),
            vmem_limit_bytes=vmem_limit),
    )(x)


# ----------------------------------------------------------------------------
# Kernel 3: tiled dense matmul  adj @ h  (bf16 operands, f32 scratch
# accumulation) with optional fused expmap0 + proj epilogue on the last layer.
# B is either k-tiled (streamed) or a single resident full block (constant
# block index -> DMA'd once) sliced with pl.ds.
# ----------------------------------------------------------------------------
def _spmm_kernel(a_ref, b_ref, o_ref, acc_ref, *, tk, resident_b, apply_expmap, c):
    l = pl.program_id(1)

    if resident_b:
        start = pl.multiple_of(l * tk, tk)
        b = b_ref[pl.ds(start, tk), :]
    else:
        b = b_ref[...]

    partial = jnp.dot(a_ref[...], b, preferred_element_type=jnp.float32)

    @pl.when(l == 0)
    def _():
        acc_ref[...] = partial          # first-iteration direct store (no zero init)

    @pl.when(l > 0)
    def _():
        acc_ref[...] += partial

    @pl.when(l == pl.num_programs(1) - 1)
    def _():
        u = acc_ref[...]
        if apply_expmap:
            # tn == full feature dim, so the row norm is complete in this tile.
            u = _expmap0_proj(u, c)
        o_ref[...] = u.astype(o_ref.dtype)


def _spmm(adj_bf16, h, *, c, apply_expmap, tm, tk, resident_b, out_dtype, vmem_limit):
    m, k = adj_bf16.shape
    k2, d = h.shape
    assert k == k2 and m % tm == 0 and k % tk == 0 and d % 128 == 0

    kernel = functools.partial(
        _spmm_kernel, tk=tk, resident_b=resident_b, apply_expmap=apply_expmap, c=c)

    if resident_b:
        b_spec = pl.BlockSpec((k, d), lambda i, l: (0, 0))       # fetched once
    else:
        b_spec = pl.BlockSpec((tk, d), lambda i, l: (l, 0))

    return pl.pallas_call(
        kernel,
        out_shape=jax.ShapeDtypeStruct((m, d), out_dtype),
        grid_spec=pltpu.PrefetchScalarGridSpec(
            num_scalar_prefetch=0,
            grid=(m // tm, k // tk),                              # reduction axis last
            in_specs=[pl.BlockSpec((tm, tk), lambda i, l: (i, l)), b_spec],
            out_specs=pl.BlockSpec((tm, d), lambda i, l: (i, 0)),
            scratch_shapes=[pltpu.VMEM((tm, d), jnp.float32)],
        ),
        compiler_params=pltpu.CompilerParams(
            dimension_semantics=("parallel", "arbitrary"),
            vmem_limit_bytes=vmem_limit),
    )(adj_bf16, h)


def _spmm_vmem_bytes(tm, tk, k, d, resident_b):
    a = 2 * tm * tk * 2                              # adj tiles, double-buffered
    b = 2 * (k * d * 2 if resident_b else tk * d * 2)
    o = 2 * tm * d * 4                               # worst case f32 output
    acc = tm * d * 4
    return a + b + o + acc


# ----------------------------------------------------------------------------
# Adjacency preparation (hoisted out of the per-forward path: call once).
# ----------------------------------------------------------------------------
def prepare_adj(adj, *, tm_cap=512, tk_cap=1024):
    n = adj.shape[0]
    assert adj.shape == (n, n)
    n_pad, tm, tk = _node_plan(n, tm_cap, tk_cap)
    adj_bf16 = jnp.pad(adj, ((0, n_pad - n), (0, n_pad - n))).astype(jnp.bfloat16)
    return adj_bf16, (n_pad, tm, tk)


# ----------------------------------------------------------------------------
# HypAgg forward (plainGCN aggregation)
# ----------------------------------------------------------------------------
def hyp_agg_forward(x, adj_bf16, plan, *, c=1.0, num_gcn_layers=2):
    n, d = x.shape
    n_pad, tm, tk = plan
    assert adj_bf16.shape == (n_pad, n_pad) and n <= n_pad

    d_pad = _round_up(d, 128)
    budget = _vmem_budget()
    tm_elem = _pick_tile(n_pad, 1024, 8)

    # Zero-pad x (zero rows/cols are exact no-ops for every op here).
    xp = jnp.pad(x, ((0, n_pad - n), (0, d_pad - d)))

    # logmap0: bf16 only when it feeds the MXU, f32 otherwise.
    tangent_dtype = jnp.bfloat16 if num_gcn_layers > 0 else jnp.float32
    x_tangent = _rowwise_call(
        functools.partial(_logmap0_kernel, c=c), xp,
        tm=tm_elem, out_dtype=tangent_dtype, vmem_limit=budget)

    if num_gcn_layers == 0:
        out = _rowwise_call(
            functools.partial(_expmap0_proj_kernel, c=c), x_tangent,
            tm=tm_elem, out_dtype=jnp.float32, vmem_limit=budget)
        return out[:n, :d]

    # Resident-B variant when the whole bf16 h fits comfortably in VMEM.
    resident_b = _spmm_vmem_bytes(tm, tk, n_pad, d_pad, True) <= int(0.85 * budget)

    # plainGCN: repeated spmm(adj, h); intermediates in bf16; expmap0 + proj
    # fused into the last layer's epilogue.
    h = x_tangent
    for layer in range(num_gcn_layers):
        last = layer == num_gcn_layers - 1
        h = _spmm(adj_bf16, h, c=c, apply_expmap=last, tm=tm, tk=tk,
                  resident_b=resident_b,
                  out_dtype=jnp.float32 if last else jnp.bfloat16,
                  vmem_limit=budget)
    return h[:n, :d]


# ----------------------------------------------------------------------------
# Pure-JAX f32 reference for verification
# ----------------------------------------------------------------------------
def _reference(x, adj, c, num_gcn_layers):
    sqrt_c = c ** 0.5
    norm = jnp.maximum(jnp.linalg.norm(x, axis=-1, keepdims=True), MIN_NORM)
    z = jnp.clip(sqrt_c * norm, -1.0 + ARTANH_EPS, 1.0 - ARTANH_EPS)
    xt = x * jnp.arctanh(z) / (sqrt_c * norm)
    h = xt
    for _ in range(num_gcn_layers):
        h = adj @ h
    un = jnp.maximum(jnp.linalg.norm(h, axis=-1, keepdims=True), MIN_NORM)
    g = jnp.tanh(sqrt_c * un) * h / (sqrt_c * un)
    gn = jnp.maximum(jnp.linalg.norm(g, axis=-1, keepdims=True), MIN_NORM)
    maxnorm = (1.0 - PROJ_EPS) / sqrt_c
    return jnp.where(gn > maxnorm, g / gn * maxnorm, g)


if __name__ == "__main__":
    key = jax.random.PRNGKey(0)
    k1, k2 = jax.random.split(key)

    num_nodes = 200          # deliberately not tile-aligned (exercises padding)
    in_features = 96         # not lane-aligned (padded to 128)
    c = 1.0
    num_gcn_layers = 2

    # Points near (but not at) the origin of the Poincare ball so the
    # logmap0 / expmap0 factors are non-trivial.
    x = 0.06 * jax.random.normal(k1, (num_nodes, in_features), jnp.float32)
    # Row-stochastic dense "adjacency" with a strong self-loop (stand-in for
    # the sparse normalized adjacency).
    a = jax.random.uniform(k2, (num_nodes, num_nodes), jnp.float32)
    adj = 0.9 * jnp.eye(num_nodes, dtype=jnp.float32) \
        + 0.1 * (a / jnp.sum(a, axis=-1, keepdims=True))

    # adj pad + bf16 cast done ONCE (hoisted out of the forward path).
    adj_bf16, plan = prepare_adj(adj)

    out = hyp_agg_forward(x, adj_bf16, plan, c=c, num_gcn_layers=num_gcn_layers)
    out = jax.block_until_ready(out)

    ref = _reference(x, adj, c, num_gcn_layers)
    assert out.shape == (num_nodes, in_features)
    err = float(jnp.max(jnp.abs(out - ref)))
    # bf16 adj + bf16 intermediate h + approx reciprocals, f32 accumulation.
    assert err < 3e-3, f"mismatch vs reference: max abs err = {err}"

    print("KERNEL_OK")
</pallas_src>

<mosaic_0001>
module attributes {stable_mosaic.version = 11 : i64} {
  func.func @_logmap0_kernel(%arg0: i32, %arg1: memref<256x128xf32, #tpu.memory_space<vmem>>, %arg2: memref<256x128xbf16, #tpu.memory_space<vmem>>) attributes {dimension_semantics = [#tpu.dimension_semantics<parallel>], iteration_bounds = array<i64: 1>, scalar_prefetch = 0 : i64, scratch_operands = 0 : i64, tpu.core_type = #tpu.core_type<tc>, window_params = [{transform_indices = @transform_0, window_bounds = array<i64: 256, 128>}, {transform_indices = @transform_1, window_bounds = array<i64: 256, 128>}]} {
    %c0 = arith.constant 0 : index
    %c0_0 = arith.constant 0 : index
    %0 = vector.load %arg1[%c0, %c0_0] : memref<256x128xf32, #tpu.memory_space<vmem>>, vector<256x128xf32>
    %cst = arith.constant 1.000000e+00 : f32
    %cst_1 = arith.constant 5.000000e-01 : f32
    %1 = math.powf %cst, %cst_1 : f32
    %2 = arith.mulf %0, %0 : vector<256x128xf32>
    %cst_2 = arith.constant dense<0.000000e+00> : vector<256xf32>
    %3 = vector.multi_reduction <add>, %2, %cst_2 [1] : vector<256x128xf32> to vector<256xf32>
    %4 = vector.shape_cast %3 : vector<256xf32> to vector<256x1xf32>
    %5 = math.sqrt %4 : vector<256x1xf32>
    %cst_3 = arith.constant 1.000000e-15 : f32
    %6 = vector.broadcast %cst_3 : f32 to vector<256x1xf32>
    %7 = arith.maximumf %5, %6 : vector<256x1xf32>
    %8 = vector.broadcast %1 : f32 to vector<256x1xf32>
    %9 = arith.mulf %8, %7 : vector<256x1xf32>
    %cst_4 = arith.constant -0.99999988 : f32
    %cst_5 = arith.constant 0.99999988 : f32
    %10 = vector.broadcast %cst_4 : f32 to vector<256x1xf32>
    %11 = arith.maximumf %10, %9 : vector<256x1xf32>
    %12 = vector.broadcast %cst_5 : f32 to vector<256x1xf32>
    %13 = arith.minimumf %12, %11 : vector<256x1xf32>
    %14 = math.log1p %13 : vector<256x1xf32>
    %cst_6 = arith.constant 0.000000e+00 : f32
    %15 = vector.broadcast %cst_6 : f32 to vector<256x1xf32>
    %16 = arith.subf %15, %13 : vector<256x1xf32>
    %17 = math.log1p %16 : vector<256x1xf32>
    %18 = arith.subf %14, %17 : vector<256x1xf32>
    %cst_7 = arith.constant 5.000000e-01 : f32
    %19 = vector.broadcast %cst_7 : f32 to vector<256x1xf32>
    %20 = arith.mulf %19, %18 : vector<256x1xf32>
    %21 = vector.broadcast %1 : f32 to vector<256x1xf32>
    %22 = arith.mulf %21, %7 : vector<256x1xf32>
    %23 = tpu.reciprocal %22 {approx = true} : vector<256x1xf32> -> vector<256x1xf32>
    %24 = arith.mulf %20, %23 : vector<256x1xf32>
    %25 = vector.broadcast %24 : vector<256x1xf32> to vector<256x128xf32>
    %26 = arith.mulf %0, %25 : vector<256x128xf32>
    %27 = arith.truncf %26 : vector<256x128xf32> to vector<256x128xbf16>
    %c0_8 = arith.constant 0 : index
    %c0_9 = arith.constant 0 : index
    %28 = vector.load %arg2[%c0_8, %c0_9] : memref<256x128xbf16, #tpu.memory_space<vmem>>, vector<256x128xbf16>
    tpu.vector_store %arg2[%c0_8, %c0_9], %27 {strides = array<i32>} : memref<256x128xbf16, #tpu.memory_space<vmem>>, vector<256x128xbf16>,
    return
  }
  func.func @transform_0(%arg0: i32) -> (i32, i32) {
    %c0_i32 = arith.constant 0 : i32
    %c0_i32_0 = arith.constant 0 : i32
    return %arg0, %c0_i32 : i32, i32
  }
  func.func @transform_1(%arg0: i32) -> (i32, i32) {
    %c0_i32 = arith.constant 0 : i32
    %c0_i32_0 = arith.constant 0 : i32
    return %arg0, %c0_i32 : i32, i32
  }
}

</mosaic_0001>

<llo_original>
// kernel: tpu_custom_call.1
$region0: #{tpu_custom_call.1}
  #allocation0 [shape = 'u32[]', space=smem, size = 0x4, offset = 0x4, fixed_abs, tag = 'smem constant byte address 0x4 - core index']
  #allocation1 [shape = 'u32[144,128]{1,0:T(1,128)}', space=vmem, size = 0x12000, scoped, tag = 'internal scratch']
  %s0 = inlined_call_operand.hbm [shape: f32[256,128], index: 0, kind: input, shape index: {}]
  %s1 = inlined_call_operand.hbm [shape: bf16[256,128], index: 1, kind: output, shape index: {}]
  %s2 = sld [smem:[#allocation0]]
  $region18: #{tpu_custom_call.1} parent=0
    _
  %s4 = ssub.s32 1, %s2
  %s5 = scalar_select 0, %s4, %s2
  $region1: #{tpu_custom_call.1} parent=0
    #allocation2 [shape = 'u8[131072]{0}', space=vmem, size = 0x20000, scoped, tag = 'input window, operand 0, single buffered']
    #allocation3 [shape = 's32[1]{0}', space=sflag, size = 0x4, scoped, tag = 'scoped memory for tpu_custom_call.1']
    #allocation4 [shape = 's32[1]{0}', space=sflag, size = 0x4, scoped, tag = 'scoped memory for tpu_custom_call.1']
    #allocation5 [shape = 'u8[65536]{0}', space=vmem, size = 0x10000, scoped, tag = 'output window, operand 0, single buffered']
    %6 = vsyncpa [#allocation3], 0
    %7 = vsyncpa [#allocation4], 0
    // Predicated region
    $region2: #{tpu_custom_call.1} parent=1 // pred_check
      _
    $region3: #{tpu_custom_call.1} parent=1 // pred_check_branch
      %9 = sbr.rel (0) target = $region5
    $region4: #{tpu_custom_call.1} parent=1 // pred_region
      %s11 = ssub.s32 4096, 4096
      %12 = vsyncadd [#allocation3], %s11
      %s13 = sshll.u32 [#allocation2], 4
      %s14 = int_to_ptr.vmem [resolvable:$true] %s13
      %19 = dma.hbm_to_vmem [thread:$0]  %s0, 4096, %s14, [#allocation3], 128, 128, 8
    $region5: #{tpu_custom_call.1} parent=1 // pred_fallthru
      _
    // Predicated region
    $region6: #{tpu_custom_call.1} parent=1 // pred_check
      _
    $region7: #{tpu_custom_call.1} parent=1 // pred_check_branch
      %21 = sbr.rel (0) target = $region9
    $region8: #{tpu_custom_call.1} parent=1 // pred_region
      %22 = dma.done [#allocation3], 4096
    $region9: #{tpu_custom_call.1} parent=1 // pred_fallthru
      _
    %v23 = vld [vmem:[#allocation2] sm:$0xff]
    %v24 = vld [vmem:[#allocation2 + $0x8] sm:$0xff]
    %v25 = vld [vmem:[#allocation2 + $0x10] sm:$0xff]
    %v26 = vld [vmem:[#allocation2 + $0x18] sm:$0xff]
    %v27 = vld [vmem:[#allocation2 + $0x20] sm:$0xff]
    %v28 = vld [vmem:[#allocation2 + $0x28] sm:$0xff]
    %v29 = vld [vmem:[#allocation2 + $0x30] sm:$0xff]
    %v30 = vld [vmem:[#allocation2 + $0x38] sm:$0xff]
    %v31 = vld [vmem:[#allocation2 + $0x40] sm:$0xff]
    %v32 = vld [vmem:[#allocation2 + $0x48] sm:$0xff]
    %v33 = vld [vmem:[#allocation2 + $0x50] sm:$0xff]
    %v34 = vld [vmem:[#allocation2 + $0x58] sm:$0xff]
    %v35 = vld [vmem:[#allocation2 + $0x60] sm:$0xff]
    %v36 = vld [vmem:[#allocation2 + $0x68] sm:$0xff]
    %v37 = vld [vmem:[#allocation2 + $0x70] sm:$0xff]
    %v38 = vld [vmem:[#allocation2 + $0x78] sm:$0xff]
    %v39 = vld [vmem:[#allocation2 + $0x80] sm:$0xff]
    %v40 = vld [vmem:[#allocation2 + $0x88] sm:$0xff]
    %v41 = vld [vmem:[#allocation2 + $0x90] sm:$0xff]
    %v42 = vld [vmem:[#allocation2 + $0x98] sm:$0xff]
    %v43 = vld [vmem:[#allocation2 + $0xa0] sm:$0xff]
    %v44 = vld [vmem:[#allocation2 + $0xa8] sm:$0xff]
    %v45 = vld [vmem:[#allocation2 + $0xb0] sm:$0xff]
    %v46 = vld [vmem:[#allocation2 + $0xb8] sm:$0xff]
    %v47 = vld [vmem:[#allocation2 + $0xc0] sm:$0xff]
    %v48 = vld [vmem:[#allocation2 + $0xc8] sm:$0xff]
    %v49 = vld [vmem:[#allocation2 + $0xd0] sm:$0xff]
    %v50 = vld [vmem:[#allocation2 + $0xd8] sm:$0xff]
    %v51 = vld [vmem:[#allocation2 + $0xe0] sm:$0xff]
    %v52 = vld [vmem:[#allocation2 + $0xe8] sm:$0xff]
    %v53 = vld [vmem:[#allocation2 + $0xf0] sm:$0xff]
    %v54 = vld [vmem:[#allocation2 + $0xf8] sm:$0xff]
    %v55 = vmul.f32 %v23, %v23
    %v56 = vmul.f32 %v24, %v24
    %v57 = vmul.f32 %v25, %v25
    %v58 = vmul.f32 %v26, %v26
    %v59 = vmul.f32 %v27, %v27
    %v60 = vmul.f32 %v28, %v28
    %v61 = vmul.f32 %v29, %v29
    %v62 = vmul.f32 %v30, %v30
    %v63 = vmul.f32 %v31, %v31
    %v64 = vmul.f32 %v32, %v32
    %v65 = vmul.f32 %v33, %v33
    %v66 = vmul.f32 %v34, %v34
    %v67 = vmul.f32 %v35, %v35
    %v68 = vmul.f32 %v36, %v36
    %v69 = vmul.f32 %v37, %v37
    %v70 = vmul.f32 %v38, %v38
    %v71 = vmul.f32 %v39, %v39
    %v72 = vmul.f32 %v40, %v40
    %v73 = vmul.f32 %v41, %v41
    %v74 = vmul.f32 %v42, %v42
    %v75 = vmul.f32 %v43, %v43
    %v76 = vmul.f32 %v44, %v44
    %v77 = vmul.f32 %v45, %v45
    %v78 = vmul.f32 %v46, %v46
    %v79 = vmul.f32 %v47, %v47
    %v80 = vmul.f32 %v48, %v48
    %v81 = vmul.f32 %v49, %v49
    %v82 = vmul.f32 %v50, %v50
    %v83 = vmul.f32 %v51, %v51
    %v84 = vmul.f32 %v52, %v52
    %v85 = vmul.f32 %v53, %v53
    %v86 = vmul.f32 %v54, %v54
    %87 = vadd.xlane.f32.xlu0 %v55
    %v88 = vpop.xlane.xlu0 %87
    %89 = vadd.xlane.f32.xlu0 %v56
    %v90 = vpop.xlane.xlu0 %89
    %91 = vadd.xlane.f32.xlu0 %v57
    %v92 = vpop.xlane.xlu0 %91
    %93 = vadd.xlane.f32.xlu0 %v58
    %v94 = vpop.xlane.xlu0 %93
    %95 = vadd.xlane.f32.xlu0 %v59
    %v96 = vpop.xlane.xlu0 %95
    %97 = vadd.xlane.f32.xlu0 %v60
    %v98 = vpop.xlane.xlu0 %97
    %99 = vadd.xlane.f32.xlu0 %v61
    %v100 = vpop.xlane.xlu0 %99
    %101 = vadd.xlane.f32.xlu0 %v62
    %v102 = vpop.xlane.xlu0 %101
    %103 = vadd.xlane.f32.xlu0 %v63
    %v104 = vpop.xlane.xlu0 %103
    %105 = vadd.xlane.f32.xlu0 %v64
    %v106 = vpop.xlane.xlu0 %105
    %107 = vadd.xlane.f32.xlu0 %v65
    %v108 = vpop.xlane.xlu0 %107
    %109 = vadd.xlane.f32.xlu0 %v66
    %v110 = vpop.xlane.xlu0 %109
    %111 = vadd.xlane.f32.xlu0 %v67
    %v112 = vpop.xlane.xlu0 %111
    %113 = vadd.xlane.f32.xlu0 %v68
    %v114 = vpop.xlane.xlu0 %113
    %115 = vadd.xlane.f32.xlu0 %v69
    %v116 = vpop.xlane.xlu0 %115
    %117 = vadd.xlane.f32.xlu0 %v70
    %v118 = vpop.xlane.xlu0 %117
    %119 = vadd.xlane.f32.xlu0 %v71
    %v120 = vpop.xlane.xlu0 %119
    %121 = vadd.xlane.f32.xlu0 %v72
    %v122 = vpop.xlane.xlu0 %121
    %123 = vadd.xlane.f32.xlu0 %v73
    %v124 = vpop.xlane.xlu0 %123
    %125 = vadd.xlane.f32.xlu0 %v74
    %v126 = vpop.xlane.xlu0 %125
    %127 = vadd.xlane.f32.xlu0 %v75
    %v128 = vpop.xlane.xlu0 %127
    %129 = vadd.xlane.f32.xlu0 %v76
    %v130 = vpop.xlane.xlu0 %129
    %131 = vadd.xlane.f32.xlu0 %v77
    %v132 = vpop.xlane.xlu0 %131
    %133 = vadd.xlane.f32.xlu0 %v78
    %v134 = vpop.xlane.xlu0 %133
    %135 = vadd.xlane.f32.xlu0 %v79
    %v136 = vpop.xlane.xlu0 %135
    %137 = vadd.xlane.f32.xlu0 %v80
    %v138 = vpop.xlane.xlu0 %137
    %139 = vadd.xlane.f32.xlu0 %v81
    %v140 = vpop.xlane.xlu0 %139
    %141 = vadd.xlane.f32.xlu0 %v82
    %v142 = vpop.xlane.xlu0 %141
    %143 = vadd.xlane.f32.xlu0 %v83
    %v144 = vpop.xlane.xlu0 %143
    %145 = vadd.xlane.f32.xlu0 %v84
    %v146 = vpop.xlane.xlu0 %145
    %147 = vadd.xlane.f32.xlu0 %v85
    %v148 = vpop.xlane.xlu0 %147
    %149 = vadd.xlane.f32.xlu0 %v86
    %v150 = vpop.xlane.xlu0 %149
    %v151 = vrsqrt.pop %v88
    %v152 = vmul.f32 %v88, %v151
    %vm153 = vcmp.eq.f32.partialorder %v88, inf
    %v154 = vsel %vm153, %v88, %v152
    %vm155 = vcmp.eq.f32.partialorder %v88, 0.0
    %v156 = vand.u32 %v88, 2147483648
    %v157 = vsel %vm155, %v156, %v154
    %v158 = vrsqrt.pop %v90
    %v159 = vmul.f32 %v90, %v158
    %vm160 = vcmp.eq.f32.partialorder %v90, inf
    %v161 = vsel %vm160, %v90, %v159
    %vm162 = vcmp.eq.f32.partialorder %v90, 0.0
    %v163 = vand.u32 %v90, 2147483648
    %v164 = vsel %vm162, %v163, %v161
    %v165 = vrsqrt.pop %v92
    %v166 = vmul.f32 %v92, %v165
    %vm167 = vcmp.eq.f32.partialorder %v92, inf
    %v168 = vsel %vm167, %v92, %v166
    %vm169 = vcmp.eq.f32.partialorder %v92, 0.0
    %v170 = vand.u32 %v92, 2147483648
    %v171 = vsel %vm169, %v170, %v168
    %v172 = vrsqrt.pop %v94
    %v173 = vmul.f32 %v94, %v172
    %vm174 = vcmp.eq.f32.partialorder %v94, inf
    %v175 = vsel %vm174, %v94, %v173
    %vm176 = vcmp.eq.f32.partialorder %v94, 0.0
    %v177 = vand.u32 %v94, 2147483648
    %v178 = vsel %vm176, %v177, %v175
    %v179 = vrsqrt.pop %v96
    %v180 = vmul.f32 %v96, %v179
    %vm181 = vcmp.eq.f32.partialorder %v96, inf
    %v182 = vsel %vm181, %v96, %v180
    %vm183 = vcmp.eq.f32.partialorder %v96, 0.0
    %v184 = vand.u32 %v96, 2147483648
    %v185 = vsel %vm183, %v184, %v182
    %v186 = vrsqrt.pop %v98
    %v187 = vmul.f32 %v98, %v186
    %vm188 = vcmp.eq.f32.partialorder %v98, inf
    %v189 = vsel %vm188, %v98, %v187
    %vm190 = vcmp.eq.f32.partialorder %v98, 0.0
    %v191 = vand.u32 %v98, 2147483648
    %v192 = vsel %vm190, %v191, %v189
    %v193 = vrsqrt.pop %v100
    %v194 = vmul.f32 %v100, %v193
    %vm195 = vcmp.eq.f32.partialorder %v100, inf
    %v196 = vsel %vm195, %v100, %v194
    %vm197 = vcmp.eq.f32.partialorder %v100, 0.0
    %v198 = vand.u32 %v100, 2147483648
    %v199 = vsel %vm197, %v198, %v196
    %v200 = vrsqrt.pop %v102
    %v201 = vmul.f32 %v102, %v200
    %vm202 = vcmp.eq.f32.partialorder %v102, inf
    %v203 = vsel %vm202, %v102, %v201
    %vm204 = vcmp.eq.f32.partialorder %v102, 0.0
    %v205 = vand.u32 %v102, 2147483648
    %v206 = vsel %vm204, %v205, %v203
    %v207 = vrsqrt.pop %v104
    %v208 = vmul.f32 %v104, %v207
    %vm209 = vcmp.eq.f32.partialorder %v104, inf
    %v210 = vsel %vm209, %v104, %v208
    %vm211 = vcmp.eq.f32.partialorder %v104, 0.0
    %v212 = vand.u32 %v104, 2147483648
    %v213 = vsel %vm211, %v212, %v210
    %v214 = vrsqrt.pop %v106
    %v215 = vmul.f32 %v106, %v214
    %vm216 = vcmp.eq.f32.partialorder %v106, inf
    %v217 = vsel %vm216, %v106, %v215
    %vm218 = vcmp.eq.f32.partialorder %v106, 0.0
    %v219 = vand.u32 %v106, 2147483648
    %v220 = vsel %vm218, %v219, %v217
    %v221 = vrsqrt.pop %v108
    %v222 = vmul.f32 %v108, %v221
    %vm223 = vcmp.eq.f32.partialorder %v108, inf
    %v224 = vsel %vm223, %v108, %v222
    %vm225 = vcmp.eq.f32.partialorder %v108, 0.0
    %v226 = vand.u32 %v108, 2147483648
    %v227 = vsel %vm225, %v226, %v224
    %v228 = vrsqrt.pop %v110
    %v229 = vmul.f32 %v110, %v228
    %vm230 = vcmp.eq.f32.partialorder %v110, inf
    %v231 = vsel %vm230, %v110, %v229
    %vm232 = vcmp.eq.f32.partialorder %v110, 0.0
    %v233 = vand.u32 %v110, 2147483648
    %v234 = vsel %vm232, %v233, %v231
    %v235 = vrsqrt.pop %v112
    %v236 = vmul.f32 %v112, %v235
    %vm237 = vcmp.eq.f32.partialorder %v112, inf
    %v238 = vsel %vm237, %v112, %v236
    %vm239 = vcmp.eq.f32.partialorder %v112, 0.0
    %v240 = vand.u32 %v112, 2147483648
    %v241 = vsel %vm239, %v240, %v238
    %v242 = vrsqrt.pop %v114
    %v243 = vmul.f32 %v114, %v242
    %vm244 = vcmp.eq.f32.partialorder %v114, inf
    %v245 = vsel %vm244, %v114, %v243
    %vm246 = vcmp.eq.f32.partialorder %v114, 0.0
    %v247 = vand.u32 %v114, 2147483648
    %v248 = vsel %vm246, %v247, %v245
    %v249 = vrsqrt.pop %v116
    %v250 = vmul.f32 %v116, %v249
    %vm251 = vcmp.eq.f32.partialorder %v116, inf
    %v252 = vsel %vm251, %v116, %v250
    %vm253 = vcmp.eq.f32.partialorder %v116, 0.0
    %v254 = vand.u32 %v116, 2147483648
    %v255 = vsel %vm253, %v254, %v252
    %v256 = vrsqrt.pop %v118
    %v257 = vmul.f32 %v118, %v256
    %vm258 = vcmp.eq.f32.partialorder %v118, inf
    %v259 = vsel %vm258, %v118, %v257
    %vm260 = vcmp.eq.f32.partialorder %v118, 0.0
    %v261 = vand.u32 %v118, 2147483648
    %v262 = vsel %vm260, %v261, %v259
    %v263 = vrsqrt.pop %v120
    %v264 = vmul.f32 %v120, %v263
    %vm265 = vcmp.eq.f32.partialorder %v120, inf
    %v266 = vsel %vm265, %v120, %v264
    %vm267 = vcmp.eq.f32.partialorder %v120, 0.0
    %v268 = vand.u32 %v120, 2147483648
    %v269 = vsel %vm267, %v268, %v266
    %v270 = vrsqrt.pop %v122
    %v271 = vmul.f32 %v122, %v270
    %vm272 = vcmp.eq.f32.partialorder %v122, inf
    %v273 = vsel %vm272, %v122, %v271
    %vm274 = vcmp.eq.f32.partialorder %v122, 0.0
    %v275 = vand.u32 %v122, 2147483648
    %v276 = vsel %vm274, %v275, %v273
    %v277 = vrsqrt.pop %v124
    %v278 = vmul.f32 %v124, %v277
    %vm279 = vcmp.eq.f32.partialorder %v124, inf
    %v280 = vsel %vm279, %v124, %v278
    %vm281 = vcmp.eq.f32.partialorder %v124, 0.0
    %v282 = vand.u32 %v124, 2147483648
    %v283 = vsel %vm281, %v282, %v280
    %v284 = vrsqrt.pop %v126
    %v285 = vmul.f32 %v126, %v284
    %vm286 = vcmp.eq.f32.partialorder %v126, inf
    %v287 = vsel %vm286, %v126, %v285
    %vm288 = vcmp.eq.f32.partialorder %v126, 0.0
    %v289 = vand.u32 %v126, 2147483648
    %v290 = vsel %vm288, %v289, %v287
    %v291 = vrsqrt.pop %v128
    %v292 = vmul.f32 %v128, %v291
    %vm293 = vcmp.eq.f32.partialorder %v128, inf
    %v294 = vsel %vm293, %v128, %v292
    %vm295 = vcmp.eq.f32.partialorder %v128, 0.0
    %v296 = vand.u32 %v128, 2147483648
    %v297 = vsel %vm295, %v296, %v294
    %v298 = vrsqrt.pop %v130
    %v299 = vmul.f32 %v130, %v298
    %vm300 = vcmp.eq.f32.partialorder %v130, inf
    %v301 = vsel %vm300, %v130, %v299
    %vm302 = vcmp.eq.f32.partialorder %v130, 0.0
    %v303 = vand.u32 %v130, 2147483648
    %v304 = vsel %vm302, %v303, %v301
    %v305 = vrsqrt.pop %v132
    %v306 = vmul.f32 %v132, %v305
    %vm307 = vcmp.eq.f32.partialorder %v132, inf
    %v308 = vsel %vm307, %v132, %v306
    %vm309 = vcmp.eq.f32.partialorder %v132, 0.0
    %v310 = vand.u32 %v132, 2147483648
    %v311 = vsel %vm309, %v310, %v308
    %v312 = vrsqrt.pop %v134
    %v313 = vmul.f32 %v134, %v312
    %vm314 = vcmp.eq.f32.partialorder %v134, inf
    %v315 = vsel %vm314, %v134, %v313
    %vm316 = vcmp.eq.f32.partialorder %v134, 0.0
    %v317 = vand.u32 %v134, 2147483648
    %v318 = vsel %vm316, %v317, %v315
    %v319 = vrsqrt.pop %v136
    %v320 = vmul.f32 %v136, %v319
    %vm321 = vcmp.eq.f32.partialorder %v136, inf
    %v322 = vsel %vm321, %v136, %v320
    %vm323 = vcmp.eq.f32.partialorder %v136, 0.0
    %v324 = vand.u32 %v136, 2147483648
    %v325 = vsel %vm323, %v324, %v322
    %v326 = vrsqrt.pop %v138
    %v327 = vmul.f32 %v138, %v326
    %vm328 = vcmp.eq.f32.partialorder %v138, inf
    %v329 = vsel %vm328, %v138, %v327
    %vm330 = vcmp.eq.f32.partialorder %v138, 0.0
    %v331 = vand.u32 %v138, 2147483648
    %v332 = vsel %vm330, %v331, %v329
    %v333 = vrsqrt.pop %v140
    %v334 = vmul.f32 %v140, %v333
    %vm335 = vcmp.eq.f32.partialorder %v140, inf
    %v336 = vsel %vm335, %v140, %v334
    %vm337 = vcmp.eq.f32.partialorder %v140, 0.0
    %v338 = vand.u32 %v140, 2147483648
    %v339 = vsel %vm337, %v338, %v336
    %v340 = vrsqrt.pop %v142
    %v341 = vmul.f32 %v142, %v340
    %vm342 = vcmp.eq.f32.partialorder %v142, inf
    %v343 = vsel %vm342, %v142, %v341
    %vm344 = vcmp.eq.f32.partialorder %v142, 0.0
    %v345 = vand.u32 %v142, 2147483648
    %v346 = vsel %vm344, %v345, %v343
    %v347 = vrsqrt.pop %v144
    %v348 = vmul.f32 %v144, %v347
    %vm349 = vcmp.eq.f32.partialorder %v144, inf
    %v350 = vsel %vm349, %v144, %v348
    %vm351 = vcmp.eq.f32.partialorder %v144, 0.0
    %v352 = vand.u32 %v144, 2147483648
    %v353 = vsel %vm351, %v352, %v350
    %v354 = vrsqrt.pop %v146
    %v355 = vmul.f32 %v146, %v354
    %vm356 = vcmp.eq.f32.partialorder %v146, inf
    %v357 = vsel %vm356, %v146, %v355
    %vm358 = vcmp.eq.f32.partialorder %v146, 0.0
    %v359 = vand.u32 %v146, 2147483648
    %v360 = vsel %vm358, %v359, %v357
    %v361 = vrsqrt.pop %v148
    %v362 = vmul.f32 %v148, %v361
    %vm363 = vcmp.eq.f32.partialorder %v148, inf
    %v364 = vsel %vm363, %v148, %v362
    %vm365 = vcmp.eq.f32.partialorder %v148, 0.0
    %v366 = vand.u32 %v148, 2147483648
    %v367 = vsel %vm365, %v366, %v364
    %v368 = vrsqrt.pop %v150
    %v369 = vmul.f32 %v150, %v368
    %vm370 = vcmp.eq.f32.partialorder %v150, inf
    %v371 = vsel %vm370, %v150, %v369
    %vm372 = vcmp.eq.f32.partialorder %v150, 0.0
    %v373 = vand.u32 %v150, 2147483648
    %v374 = vsel %vm372, %v373, %v371
    %v375 = vmax.f32 %v157, 1e-15
    %v376 = vmax.f32 %v164, 1e-15
    %v377 = vmax.f32 %v171, 1e-15
    %v378 = vmax.f32 %v178, 1e-15
    %v379 = vmax.f32 %v185, 1e-15
    %v380 = vmax.f32 %v192, 1e-15
    %v381 = vmax.f32 %v199, 1e-15
    %v382 = vmax.f32 %v206, 1e-15
    %v383 = vmax.f32 %v213, 1e-15
    %v384 = vmax.f32 %v220, 1e-15
    %v385 = vmax.f32 %v227, 1e-15
    %v386 = vmax.f32 %v234, 1e-15
    %v387 = vmax.f32 %v241, 1e-15
    %v388 = vmax.f32 %v248, 1e-15
    %v389 = vmax.f32 %v255, 1e-15
    %v390 = vmax.f32 %v262, 1e-15
    %v391 = vmax.f32 %v269, 1e-15
    %v392 = vmax.f32 %v276, 1e-15
    %v393 = vmax.f32 %v283, 1e-15
    %v394 = vmax.f32 %v290, 1e-15
    %v395 = vmax.f32 %v297, 1e-15
    %v396 = vmax.f32 %v304, 1e-15
    %v397 = vmax.f32 %v311, 1e-15
    %v398 = vmax.f32 %v318, 1e-15
    %v399 = vmax.f32 %v325, 1e-15
    %v400 = vmax.f32 %v332, 1e-15
    %v401 = vmax.f32 %v339, 1e-15
    %v402 = vmax.f32 %v346, 1e-15
    %v403 = vmax.f32 %v353, 1e-15
    %v404 = vmax.f32 %v360, 1e-15
    %v405 = vmax.f32 %v367, 1e-15
    %v406 = vmax.f32 %v374, 1e-15
    %v407 = vmax.f32 %v375, -0.9999999
    %v408 = vmax.f32 %v376, -0.9999999
    %v409 = vmax.f32 %v377, -0.9999999
    %v410 = vmax.f32 %v378, -0.9999999
    %v411 = vmax.f32 %v379, -0.9999999
    %v412 = vmax.f32 %v380, -0.9999999
    %v413 = vmax.f32 %v381, -0.9999999
    %v414 = vmax.f32 %v382, -0.9999999
    %v415 = vmax.f32 %v383, -0.9999999
    %v416 = vmax.f32 %v384, -0.9999999
    %v417 = vmax.f32 %v385, -0.9999999
    %v418 = vmax.f32 %v386, -0.9999999
    %v419 = vmax.f32 %v387, -0.9999999
    %v420 = vmax.f32 %v388, -0.9999999
    %v421 = vmax.f32 %v389, -0.9999999
    %v422 = vmax.f32 %v390, -0.9999999
    %v423 = vmax.f32 %v391, -0.9999999
    %v424 = vmax.f32 %v392, -0.9999999
    %v425 = vmax.f32 %v393, -0.9999999
    %v426 = vmax.f32 %v394, -0.9999999
    %v427 = vmax.f32 %v395, -0.9999999
    %v428 = vmax.f32 %v396, -0.9999999
    %v429 = vmax.f32 %v397, -0.9999999
    %v430 = vmax.f32 %v398, -0.9999999
    %v431 = vmax.f32 %v399, -0.9999999
    %v432 = vmax.f32 %v400, -0.9999999
    %v433 = vmax.f32 %v401, -0.9999999
    %v434 = vmax.f32 %v402, -0.9999999
    %v435 = vmax.f32 %v403, -0.9999999
    %v436 = vmax.f32 %v404, -0.9999999
    %v437 = vmax.f32 %v405, -0.9999999
    %v438 = vmax.f32 %v406, -0.9999999
    %v439 = vmin.f32 %v407, 0.9999999
    %v440 = vmin.f32 %v408, 0.9999999
    %v441 = vmin.f32 %v409, 0.9999999
    %v442 = vmin.f32 %v410, 0.9999999
    %v443 = vmin.f32 %v411, 0.9999999
    %v444 = vmin.f32 %v412, 0.9999999
    %v445 = vmin.f32 %v413, 0.9999999
    %v446 = vmin.f32 %v414, 0.9999999
    %v447 = vmin.f32 %v415, 0.9999999
    %v448 = vmin.f32 %v416, 0.9999999
    %v449 = vmin.f32 %v417, 0.9999999
    %v450 = vmin.f32 %v418, 0.9999999
    %v451 = vmin.f32 %v419, 0.9999999
    %v452 = vmin.f32 %v420, 0.9999999
    %v453 = vmin.f32 %v421, 0.9999999
    %v454 = vmin.f32 %v422, 0.9999999
    %v455 = vmin.f32 %v423, 0.9999999
    %v456 = vmin.f32 %v424, 0.9999999
    %v457 = vmin.f32 %v425, 0.9999999
    %v458 = vmin.f32 %v426, 0.9999999
    %v459 = vmin.f32 %v427, 0.9999999
    %v460 = vmin.f32 %v428, 0.9999999
    %v461 = vmin.f32 %v429, 0.9999999
    %v462 = vmin.f32 %v430, 0.9999999
    %v463 = vmin.f32 %v431, 0.9999999
    %v464 = vmin.f32 %v432, 0.9999999
    %v465 = vmin.f32 %v433, 0.9999999
    %v466 = vmin.f32 %v434, 0.9999999
    %v467 = vmin.f32 %v435, 0.9999999
    %v468 = vmin.f32 %v436, 0.9999999
    %v469 = vmin.f32 %v437, 0.9999999
    %v470 = vmin.f32 %v438, 0.9999999
    %v471 = vadd.f32 %v439, 1.0
    %v472 = vlog2.pop %v471
    %v473 = vmul.f32 %v472, 0.6931472
    %v474 = vmul.f32 -0.5, %v439
    %v475 = vadd.f32 %v474, 1.0
    %v476 = vmul.f32 %v475, %v439
    %v477 = vand.u32 2147483647, %v439
    %vm478 = vcmp.lt.f32.partialorder %v477, 0.0004427343
    %v479 = vsel %vm478, %v476, %v473
    %v480 = vadd.f32 %v440, 1.0
    %v481 = vlog2.pop %v480
    %v482 = vmul.f32 %v481, 0.6931472
    %v483 = vmul.f32 -0.5, %v440
    %v484 = vadd.f32 %v483, 1.0
    %v485 = vmul.f32 %v484, %v440
    %v486 = vand.u32 2147483647, %v440
    %vm487 = vcmp.lt.f32.partialorder %v486, 0.0004427343
    %v488 = vsel %vm487, %v485, %v482
    %v489 = vadd.f32 %v441, 1.0
    %v490 = vlog2.pop %v489
    %v491 = vmul.f32 %v490, 0.6931472
    %v492 = vmul.f32 -0.5, %v441
    %v493 = vadd.f32 %v492, 1.0
    %v494 = vmul.f32 %v493, %v441
    %v495 = vand.u32 2147483647, %v441
    %vm496 = vcmp.lt.f32.partialorder %v495, 0.0004427343
    %v497 = vsel %vm496, %v494, %v491
    %v498 = vadd.f32 %v442, 1.0
    %v499 = vlog2.pop %v498
    %v500 = vmul.f32 %v499, 0.6931472
    %v501 = vmul.f32 -0.5, %v442
    %v502 = vadd.f32 %v501, 1.0
    %v503 = vmul.f32 %v502, %v442
    %v504 = vand.u32 2147483647, %v442
    %vm505 = vcmp.lt.f32.partialorder %v504, 0.0004427343
    %v506 = vsel %vm505, %v503, %v500
    %v507 = vadd.f32 %v443, 1.0
    %v508 = vlog2.pop %v507
    %v509 = vmul.f32 %v508, 0.6931472
    %v510 = vmul.f32 -0.5, %v443
    %v511 = vadd.f32 %v510, 1.0
    %v512 = vmul.f32 %v511, %v443
    %v513 = vand.u32 2147483647, %v443
    %vm514 = vcmp.lt.f32.partialorder %v513, 0.0004427343
    %v515 = vsel %vm514, %v512, %v509
    %v516 = vadd.f32 %v444, 1.0
    %v517 = vlog2.pop %v516
    %v518 = vmul.f32 %v517, 0.6931472
    %v519 = vmul.f32 -0.5, %v444
    %v520 = vadd.f32 %v519, 1.0
    %v521 = vmul.f32 %v520, %v444
    %v522 = vand.u32 2147483647, %v444
    %vm523 = vcmp.lt.f32.partialorder %v522, 0.0004427343
    %v524 = vsel %vm523, %v521, %v518
    %v525 = vadd.f32 %v445, 1.0
    %v526 = vlog2.pop %v525
    %v527 = vmul.f32 %v526, 0.6931472
    %v528 = vmul.f32 -0.5, %v445
    %v529 = vadd.f32 %v528, 1.0
    %v530 = vmul.f32 %v529, %v445
    %v531 = vand.u32 2147483647, %v445
    %vm532 = vcmp.lt.f32.partialorder %v531, 0.0004427343
    %v533 = vsel %vm532, %v530, %v527
    %v534 = vadd.f32 %v446, 1.0
    %v535 = vlog2.pop %v534
    %v536 = vmul.f32 %v535, 0.6931472
    %v537 = vmul.f32 -0.5, %v446
    %v538 = vadd.f32 %v537, 1.0
    %v539 = vmul.f32 %v538, %v446
    %v540 = vand.u32 2147483647, %v446
    %vm541 = vcmp.lt.f32.partialorder %v540, 0.0004427343
    %v542 = vsel %vm541, %v539, %v536
    %v543 = vadd.f32 %v447, 1.0
    %v544 = vlog2.pop %v543
    %v545 = vmul.f32 %v544, 0.6931472
    %v546 = vmul.f32 -0.5, %v447
    %v547 = vadd.f32 %v546, 1.0
    %v548 = vmul.f32 %v547, %v447
    %v549 = vand.u32 2147483647, %v447
    %vm550 = vcmp.lt.f32.partialorder %v549, 0.0004427343
    %v551 = vsel %vm550, %v548, %v545
    %v552 = vadd.f32 %v448, 1.0
    %v553 = vlog2.pop %v552
    %v554 = vmul.f32 %v553, 0.6931472
    %v555 = vmul.f32 -0.5, %v448
    %v556 = vadd.f32 %v555, 1.0
    %v557 = vmul.f32 %v556, %v448
    %v558 = vand.u32 2147483647, %v448
    %vm559 = vcmp.lt.f32.partialorder %v558, 0.0004427343
    %v560 = vsel %vm559, %v557, %v554
    %v561 = vadd.f32 %v449, 1.0
    %v562 = vlog2.pop %v561
    %v563 = vmul.f32 %v562, 0.6931472
    %v564 = vmul.f32 -0.5, %v449
    %v565 = vadd.f32 %v564, 1.0
    %v566 = vmul.f32 %v565, %v449
    %v567 = vand.u32 2147483647, %v449
    %vm568 = vcmp.lt.f32.partialorder %v567, 0.0004427343
    %v569 = vsel %vm568, %v566, %v563
    %v570 = vadd.f32 %v450, 1.0
    %v571 = vlog2.pop %v570
    %v572 = vmul.f32 %v571, 0.6931472
    %v573 = vmul.f32 -0.5, %v450
    %v574 = vadd.f32 %v573, 1.0
    %v575 = vmul.f32 %v574, %v450
    %v576 = vand.u32 2147483647, %v450
    %vm577 = vcmp.lt.f32.partialorder %v576, 0.0004427343
    %v578 = vsel %vm577, %v575, %v572
    %v579 = vadd.f32 %v451, 1.0
    %v580 = vlog2.pop %v579
    %v581 = vmul.f32 %v580, 0.6931472
    %v582 = vmul.f32 -0.5, %v451
    %v583 = vadd.f32 %v582, 1.0
    %v584 = vmul.f32 %v583, %v451
    %v585 = vand.u32 2147483647, %v451
    %vm586 = vcmp.lt.f32.partialorder %v585, 0.0004427343
    %v587 = vsel %vm586, %v584, %v581
    %v588 = vadd.f32 %v452, 1.0
    %v589 = vlog2.pop %v588
    %v590 = vmul.f32 %v589, 0.6931472
    %v591 = vmul.f32 -0.5, %v452
    %v592 = vadd.f32 %v591, 1.0
    %v593 = vmul.f32 %v592, %v452
    %v594 = vand.u32 2147483647, %v452
    %vm595 = vcmp.lt.f32.partialorder %v594, 0.0004427343
    %v596 = vsel %vm595, %v593, %v590
    %v597 = vadd.f32 %v453, 1.0
    %v598 = vlog2.pop %v597
    %v599 = vmul.f32 %v598, 0.6931472
    %v600 = vmul.f32 -0.5, %v453
    %v601 = vadd.f32 %v600, 1.0
    %v602 = vmul.f32 %v601, %v453
    %v603 = vand.u32 2147483647, %v453
    %vm604 = vcmp.lt.f32.partialorder %v603, 0.0004427343
    %v605 = vsel %vm604, %v602, %v599
    %v606 = vadd.f32 %v454, 1.0
    %v607 = vlog2.pop %v606
    %v608 = vmul.f32 %v607, 0.6931472
    %v609 = vmul.f32 -0.5, %v454
    %v610 = vadd.f32 %v609, 1.0
    %v611 = vmul.f32 %v610, %v454
    %v612 = vand.u32 2147483647, %v454
    %vm613 = vcmp.lt.f32.partialorder %v612, 0.0004427343
    %v614 = vsel %vm613, %v611, %v608
    %v615 = vadd.f32 %v455, 1.0
    %v616 = vlog2.pop %v615
    %v617 = vmul.f32 %v616, 0.6931472
    %v618 = vmul.f32 -0.5, %v455
    %v619 = vadd.f32 %v618, 1.0
    %v620 = vmul.f32 %v619, %v455
    %v621 = vand.u32 2147483647, %v455
    %vm622 = vcmp.lt.f32.partialorder %v621, 0.0004427343
    %v623 = vsel %vm622, %v620, %v617
    %v624 = vadd.f32 %v456, 1.0
    %v625 = vlog2.pop %v624
    %v626 = vmul.f32 %v625, 0.6931472
    %v627 = vmul.f32 -0.5, %v456
    %v628 = vadd.f32 %v627, 1.0
    %v629 = vmul.f32 %v628, %v456
    %v630 = vand.u32 2147483647, %v456
    %vm631 = vcmp.lt.f32.partialorder %v630, 0.0004427343
    %v632 = vsel %vm631, %v629, %v626
    %v633 = vadd.f32 %v457, 1.0
    %v634 = vlog2.pop %v633
    %v635 = vmul.f32 %v634, 0.6931472
    %v636 = vmul.f32 -0.5, %v457
    %v637 = vadd.f32 %v636, 1.0
    %v638 = vmul.f32 %v637, %v457
    %v639 = vand.u32 2147483647, %v457
    %vm640 = vcmp.lt.f32.partialorder %v639, 0.0004427343
    %v641 = vsel %vm640, %v638, %v635
    %v642 = vadd.f32 %v458, 1.0
    %v643 = vlog2.pop %v642
    %v644 = vmul.f32 %v643, 0.6931472
    %v645 = vmul.f32 -0.5, %v458
    %v646 = vadd.f32 %v645, 1.0
    %v647 = vmul.f32 %v646, %v458
    %v648 = vand.u32 2147483647, %v458
    %vm649 = vcmp.lt.f32.partialorder %v648, 0.0004427343
    %v650 = vsel %vm649, %v647, %v644
    %v651 = vadd.f32 %v459, 1.0
    %v652 = vlog2.pop %v651
    %v653 = vmul.f32 %v652, 0.6931472
    %v654 = vmul.f32 -0.5, %v459
    %v655 = vadd.f32 %v654, 1.0
    %v656 = vmul.f32 %v655, %v459
    %v657 = vand.u32 2147483647, %v459
    %vm658 = vcmp.lt.f32.partialorder %v657, 0.0004427343
    %v659 = vsel %vm658, %v656, %v653
    %v660 = vadd.f32 %v460, 1.0
    %v661 = vlog2.pop %v660
    %v662 = vmul.f32 %v661, 0.6931472
    %v663 = vmul.f32 -0.5, %v460
    %v664 = vadd.f32 %v663, 1.0
    %v665 = vmul.f32 %v664, %v460
    %v666 = vand.u32 2147483647, %v460
    %vm667 = vcmp.lt.f32.partialorder %v666, 0.0004427343
    %v668 = vsel %vm667, %v665, %v662
    %v669 = vadd.f32 %v461, 1.0
    %v670 = vlog2.pop %v669
    %v671 = vmul.f32 %v670, 0.6931472
    %v672 = vmul.f32 -0.5, %v461
    %v673 = vadd.f32 %v672, 1.0
    %v674 = vmul.f32 %v673, %v461
    %v675 = vand.u32 2147483647, %v461
    %vm676 = vcmp.lt.f32.partialorder %v675, 0.0004427343
    %v677 = vsel %vm676, %v674, %v671
    %v678 = vadd.f32 %v462, 1.0
    %v679 = vlog2.pop %v678
    %v680 = vmul.f32 %v679, 0.6931472
    %v681 = vmul.f32 -0.5, %v462
    %v682 = vadd.f32 %v681, 1.0
    %v683 = vmul.f32 %v682, %v462
    %v684 = vand.u32 2147483647, %v462
    %vm685 = vcmp.lt.f32.partialorder %v684, 0.0004427343
    %v686 = vsel %vm685, %v683, %v680
    %v687 = vadd.f32 %v463, 1.0
    %v688 = vlog2.pop %v687
    %v689 = vmul.f32 %v688, 0.6931472
    %v690 = vmul.f32 -0.5, %v463
    %v691 = vadd.f32 %v690, 1.0
    %v692 = vmul.f32 %v691, %v463
    %v693 = vand.u32 2147483647, %v463
    %vm694 = vcmp.lt.f32.partialorder %v693, 0.0004427343
    %v695 = vsel %vm694, %v692, %v689
    %v696 = vadd.f32 %v464, 1.0
    %v697 = vlog2.pop %v696
    %v698 = vmul.f32 %v697, 0.6931472
    %v699 = vmul.f32 -0.5, %v464
    %v700 = vadd.f32 %v699, 1.0
    %v701 = vmul.f32 %v700, %v464
    %v702 = vand.u32 2147483647, %v464
    %vm703 = vcmp.lt.f32.partialorder %v702, 0.0004427343
    %v704 = vsel %vm703, %v701, %v698
    %v705 = vadd.f32 %v465, 1.0
    %v706 = vlog2.pop %v705
    %v707 = vmul.f32 %v706, 0.6931472
    %v708 = vmul.f32 -0.5, %v465
    %v709 = vadd.f32 %v708, 1.0
    %v710 = vmul.f32 %v709, %v465
    %v711 = vand.u32 2147483647, %v465
    %vm712 = vcmp.lt.f32.partialorder %v711, 0.0004427343
    %v713 = vsel %vm712, %v710, %v707
    %v714 = vadd.f32 %v466, 1.0
    %v715 = vlog2.pop %v714
    %v716 = vmul.f32 %v715, 0.6931472
    %v717 = vmul.f32 -0.5, %v466
    %v718 = vadd.f32 %v717, 1.0
    %v719 = vmul.f32 %v718, %v466
    %v720 = vand.u32 2147483647, %v466
    %vm721 = vcmp.lt.f32.partialorder %v720, 0.0004427343
    %v722 = vsel %vm721, %v719, %v716
    %v723 = vadd.f32 %v467, 1.0
    %v724 = vlog2.pop %v723
    %v725 = vmul.f32 %v724, 0.6931472
    %v726 = vmul.f32 -0.5, %v467
    %v727 = vadd.f32 %v726, 1.0
    %v728 = vmul.f32 %v727, %v467
    %v729 = vand.u32 2147483647, %v467
    %vm730 = vcmp.lt.f32.partialorder %v729, 0.0004427343
    %v731 = vsel %vm730, %v728, %v725
    %v732 = vadd.f32 %v468, 1.0
    %v733 = vlog2.pop %v732
    %v734 = vmul.f32 %v733, 0.6931472
    %v735 = vmul.f32 -0.5, %v468
    %v736 = vadd.f32 %v735, 1.0
    %v737 = vmul.f32 %v736, %v468
    %v738 = vand.u32 2147483647, %v468
    %vm739 = vcmp.lt.f32.partialorder %v738, 0.0004427343
    %v740 = vsel %vm739, %v737, %v734
    %v741 = vadd.f32 %v469, 1.0
    %v742 = vlog2.pop %v741
    %v743 = vmul.f32 %v742, 0.6931472
    %v744 = vmul.f32 -0.5, %v469
    %v745 = vadd.f32 %v744, 1.0
    %v746 = vmul.f32 %v745, %v469
    %v747 = vand.u32 2147483647, %v469
    %vm748 = vcmp.lt.f32.partialorder %v747, 0.0004427343
    %v749 = vsel %vm748, %v746, %v743
    %v750 = vadd.f32 %v470, 1.0
    %v751 = vlog2.pop %v750
    %v752 = vmul.f32 %v751, 0.6931472
    %v753 = vmul.f32 -0.5, %v470
    %v754 = vadd.f32 %v753, 1.0
    %v755 = vmul.f32 %v754, %v470
    %v756 = vand.u32 2147483647, %v470
    %vm757 = vcmp.lt.f32.partialorder %v756, 0.0004427343
    %v758 = vsel %vm757, %v755, %v752
    %v759 = vsub.f32 0.0, %v439
    %v760 = vsub.f32 0.0, %v440
    %v761 = vsub.f32 0.0, %v441
    %v762 = vsub.f32 0.0, %v442
    %v763 = vsub.f32 0.0, %v443
    %v764 = vsub.f32 0.0, %v444
    %v765 = vsub.f32 0.0, %v445
    %v766 = vsub.f32 0.0, %v446
    %v767 = vsub.f32 0.0, %v447
    %v768 = vsub.f32 0.0, %v448
    %v769 = vsub.f32 0.0, %v449
    %v770 = vsub.f32 0.0, %v450
    %v771 = vsub.f32 0.0, %v451
    %v772 = vsub.f32 0.0, %v452
    %v773 = vsub.f32 0.0, %v453
    %v774 = vsub.f32 0.0, %v454
    %v775 = vsub.f32 0.0, %v455
    %v776 = vsub.f32 0.0, %v456
    %v777 = vsub.f32 0.0, %v457
    %v778 = vsub.f32 0.0, %v458
    %v779 = vsub.f32 0.0, %v459
    %v780 = vsub.f32 0.0, %v460
    %v781 = vsub.f32 0.0, %v461
    %v782 = vsub.f32 0.0, %v462
    %v783 = vsub.f32 0.0, %v463
    %v784 = vsub.f32 0.0, %v464
    %v785 = vsub.f32 0.0, %v465
    %v786 = vsub.f32 0.0, %v466
    %v787 = vsub.f32 0.0, %v467
    %v788 = vsub.f32 0.0, %v468
    %v789 = vsub.f32 0.0, %v469
    %v790 = vsub.f32 0.0, %v470
    %v791 = vadd.f32 %v759, 1.0
    %v792 = vlog2.pop %v791
    %v793 = vmul.f32 %v792, 0.6931472
    %v794 = vmul.f32 -0.5, %v759
    %v795 = vadd.f32 %v794, 1.0
    %v796 = vmul.f32 %v795, %v759
    %v797 = vand.u32 2147483647, %v759
    %vm798 = vcmp.lt.f32.partialorder %v797, 0.0004427343
    %v799 = vsel %vm798, %v796, %v793
    %v800 = vadd.f32 %v760, 1.0
    %v801 = vlog2.pop %v800
    %v802 = vmul.f32 %v801, 0.6931472
    %v803 = vmul.f32 -0.5, %v760
    %v804 = vadd.f32 %v803, 1.0
    %v805 = vmul.f32 %v804, %v760
    %v806 = vand.u32 2147483647, %v760
    %vm807 = vcmp.lt.f32.partialorder %v806, 0.0004427343
    %v808 = vsel %vm807, %v805, %v802
    %v809 = vadd.f32 %v761, 1.0
    %v810 = vlog2.pop %v809
    %v811 = vmul.f32 %v810, 0.6931472
    %v812 = vmul.f32 -0.5, %v761
    %v813 = vadd.f32 %v812, 1.0
    %v814 = vmul.f32 %v813, %v761
    %v815 = vand.u32 2147483647, %v761
    %vm816 = vcmp.lt.f32.partialorder %v815, 0.0004427343
    %v817 = vsel %vm816, %v814, %v811
    %v818 = vadd.f32 %v762, 1.0
    %v819 = vlog2.pop %v818
    %v820 = vmul.f32 %v819, 0.6931472
    %v821 = vmul.f32 -0.5, %v762
    %v822 = vadd.f32 %v821, 1.0
    %v823 = vmul.f32 %v822, %v762
    %v824 = vand.u32 2147483647, %v762
    %vm825 = vcmp.lt.f32.partialorder %v824, 0.0004427343
    %v826 = vsel %vm825, %v823, %v820
    %v827 = vadd.f32 %v763, 1.0
    %v828 = vlog2.pop %v827
    %v829 = vmul.f32 %v828, 0.6931472
    %v830 = vmul.f32 -0.5, %v763
    %v831 = vadd.f32 %v830, 1.0
    %v832 = vmul.f32 %v831, %v763
    %v833 = vand.u32 2147483647, %v763
    %vm834 = vcmp.lt.f32.partialorder %v833, 0.0004427343
    %v835 = vsel %vm834, %v832, %v829
    %v836 = vadd.f32 %v764, 1.0
    %v837 = vlog2.pop %v836
    %v838 = vmul.f32 %v837, 0.6931472
    %v839 = vmul.f32 -0.5, %v764
    %v840 = vadd.f32 %v839, 1.0
    %v841 = vmul.f32 %v840, %v764
    %v842 = vand.u32 2147483647, %v764
    %vm843 = vcmp.lt.f32.partialorder %v842, 0.0004427343
    %v844 = vsel %vm843, %v841, %v838
    %v845 = vadd.f32 %v765, 1.0
    %v846 = vlog2.pop %v845
    %v847 = vmul.f32 %v846, 0.6931472
    %v848 = vmul.f32 -0.5, %v765
    %v849 = vadd.f32 %v848, 1.0
    %v850 = vmul.f32 %v849, %v765
    %v851 = vand.u32 2147483647, %v765
    %vm852 = vcmp.lt.f32.partialorder %v851, 0.0004427343
    %v853 = vsel %vm852, %v850, %v847
    %v854 = vadd.f32 %v766, 1.0
    %v855 = vlog2.pop %v854
    %v856 = vmul.f32 %v855, 0.6931472
    %v857 = vmul.f32 -0.5, %v766
    %v858 = vadd.f32 %v857, 1.0
    %v859 = vmul.f32 %v858, %v766
    %v860 = vand.u32 2147483647, %v766
    %vm861 = vcmp.lt.f32.partialorder %v860, 0.0004427343
    %v862 = vsel %vm861, %v859, %v856
    %v863 = vadd.f32 %v767, 1.0
    %v864 = vlog2.pop %v863
    %v865 = vmul.f32 %v864, 0.6931472
    %v866 = vmul.f32 -0.5, %v767
    %v867 = vadd.f32 %v866, 1.0
    %v868 = vmul.f32 %v867, %v767
    %v869 = vand.u32 2147483647, %v767
    %vm870 = vcmp.lt.f32.partialorder %v869, 0.0004427343
    %v871 = vsel %vm870, %v868, %v865
    %v872 = vadd.f32 %v768, 1.0
    %v873 = vlog2.pop %v872
    %v874 = vmul.f32 %v873, 0.6931472
    %v875 = vmul.f32 -0.5, %v768
    %v876 = vadd.f32 %v875, 1.0
    %v877 = vmul.f32 %v876, %v768
    %v878 = vand.u32 2147483647, %v768
    %vm879 = vcmp.lt.f32.partialorder %v878, 0.0004427343
    %v880 = vsel %vm879, %v877, %v874
    %v881 = vadd.f32 %v769, 1.0
    %v882 = vlog2.pop %v881
    %v883 = vmul.f32 %v882, 0.6931472
    %v884 = vmul.f32 -0.5, %v769
    %v885 = vadd.f32 %v884, 1.0
    %v886 = vmul.f32 %v885, %v769
    %v887 = vand.u32 2147483647, %v769
    %vm888 = vcmp.lt.f32.partialorder %v887, 0.0004427343
    %v889 = vsel %vm888, %v886, %v883
    %v890 = vadd.f32 %v770, 1.0
    %v891 = vlog2.pop %v890
    %v892 = vmul.f32 %v891, 0.6931472
    %v893 = vmul.f32 -0.5, %v770
    %v894 = vadd.f32 %v893, 1.0
    %v895 = vmul.f32 %v894, %v770
    %v896 = vand.u32 2147483647, %v770
    %vm897 = vcmp.lt.f32.partialorder %v896, 0.0004427343
    %v898 = vsel %vm897, %v895, %v892
    %v899 = vadd.f32 %v771, 1.0
    %v900 = vlog2.pop %v899
    %v901 = vmul.f32 %v900, 0.6931472
    %v902 = vmul.f32 -0.5, %v771
    %v903 = vadd.f32 %v902, 1.0
    %v904 = vmul.f32 %v903, %v771
    %v905 = vand.u32 2147483647, %v771
    %vm906 = vcmp.lt.f32.partialorder %v905, 0.0004427343
    %v907 = vsel %vm906, %v904, %v901
    %v908 = vadd.f32 %v772, 1.0
    %v909 = vlog2.pop %v908
    %v910 = vmul.f32 %v909, 0.6931472
    %v911 = vmul.f32 -0.5, %v772
    %v912 = vadd.f32 %v911, 1.0
    %v913 = vmul.f32 %v912, %v772
    %v914 = vand.u32 2147483647, %v772
    %vm915 = vcmp.lt.f32.partialorder %v914, 0.0004427343
    %v916 = vsel %vm915, %v913, %v910
    %v917 = vadd.f32 %v773, 1.0
    %v918 = vlog2.pop %v917
    %v919 = vmul.f32 %v918, 0.6931472
    %v920 = vmul.f32 -0.5, %v773
    %v921 = vadd.f32 %v920, 1.0
    %v922 = vmul.f32 %v921, %v773
    %v923 = vand.u32 2147483647, %v773
    %vm924 = vcmp.lt.f32.partialorder %v923, 0.0004427343
    %v925 = vsel %vm924, %v922, %v919
    %v926 = vadd.f32 %v774, 1.0
    %v927 = vlog2.pop %v926
    %v928 = vmul.f32 %v927, 0.6931472
    %v929 = vmul.f32 -0.5, %v774
    %v930 = vadd.f32 %v929, 1.0
    %v931 = vmul.f32 %v930, %v774
    %v932 = vand.u32 2147483647, %v774
    %vm933 = vcmp.lt.f32.partialorder %v932, 0.0004427343
    %v934 = vsel %vm933, %v931, %v928
    %v935 = vadd.f32 %v775, 1.0
    %v936 = vlog2.pop %v935
    %v937 = vmul.f32 %v936, 0.6931472
    %v938 = vmul.f32 -0.5, %v775
    %v939 = vadd.f32 %v938, 1.0
    %v940 = vmul.f32 %v939, %v775
    %v941 = vand.u32 2147483647, %v775
    %vm942 = vcmp.lt.f32.partialorder %v941, 0.0004427343
    %v943 = vsel %vm942, %v940, %v937
    %v944 = vadd.f32 %v776, 1.0
    %v945 = vlog2.pop %v944
    %v946 = vmul.f32 %v945, 0.6931472
    %v947 = vmul.f32 -0.5, %v776
    %v948 = vadd.f32 %v947, 1.0
    %v949 = vmul.f32 %v948, %v776
    %v950 = vand.u32 2147483647, %v776
    %vm951 = vcmp.lt.f32.partialorder %v950, 0.0004427343
    %v952 = vsel %vm951, %v949, %v946
    %v953 = vadd.f32 %v777, 1.0
    %v954 = vlog2.pop %v953
    %v955 = vmul.f32 %v954, 0.6931472
    %v956 = vmul.f32 -0.5, %v777
    %v957 = vadd.f32 %v956, 1.0
    %v958 = vmul.f32 %v957, %v777
    %v959 = vand.u32 2147483647, %v777
    %vm960 = vcmp.lt.f32.partialorder %v959, 0.0004427343
    %v961 = vsel %vm960, %v958, %v955
    %v962 = vadd.f32 %v778, 1.0
    %v963 = vlog2.pop %v962
    %v964 = vmul.f32 %v963, 0.6931472
    %v965 = vmul.f32 -0.5, %v778
    %v966 = vadd.f32 %v965, 1.0
    %v967 = vmul.f32 %v966, %v778
    %v968 = vand.u32 2147483647, %v778
    %vm969 = vcmp.lt.f32.partialorder %v968, 0.0004427343
    %v970 = vsel %vm969, %v967, %v964
    %v971 = vadd.f32 %v779, 1.0
    %v972 = vlog2.pop %v971
    %v973 = vmul.f32 %v972, 0.6931472
    %v974 = vmul.f32 -0.5, %v779
    %v975 = vadd.f32 %v974, 1.0
    %v976 = vmul.f32 %v975, %v779
    %v977 = vand.u32 2147483647, %v779
    %vm978 = vcmp.lt.f32.partialorder %v977, 0.0004427343
    %v979 = vsel %vm978, %v976, %v973
    %v980 = vadd.f32 %v780, 1.0
    %v981 = vlog2.pop %v980
    %v982 = vmul.f32 %v981, 0.6931472
    %v983 = vmul.f32 -0.5, %v780
    %v984 = vadd.f32 %v983, 1.0
    %v985 = vmul.f32 %v984, %v780
    %v986 = vand.u32 2147483647, %v780
    %vm987 = vcmp.lt.f32.partialorder %v986, 0.0004427343
    %v988 = vsel %vm987, %v985, %v982
    %v989 = vadd.f32 %v781, 1.0
    %v990 = vlog2.pop %v989
    %v991 = vmul.f32 %v990, 0.6931472
    %v992 = vmul.f32 -0.5, %v781
    %v993 = vadd.f32 %v992, 1.0
    %v994 = vmul.f32 %v993, %v781
    %v995 = vand.u32 2147483647, %v781
    %vm996 = vcmp.lt.f32.partialorder %v995, 0.0004427343
    %v997 = vsel %vm996, %v994, %v991
    %v998 = vadd.f32 %v782, 1.0
    %v999 = vlog2.pop %v998
    %v1000 = vmul.f32 %v999, 0.6931472
    %v1001 = vmul.f32 -0.5, %v782
    %v1002 = vadd.f32 %v1001, 1.0
    %v1003 = vmul.f32 %v1002, %v782
    %v1004 = vand.u32 2147483647, %v782
    %vm1005 = vcmp.lt.f32.partialorder %v1004, 0.0004427343
    %v1006 = vsel %vm1005, %v1003, %v1000
    %v1007 = vadd.f32 %v783, 1.0
    %v1008 = vlog2.pop %v1007
    %v1009 = vmul.f32 %v1008, 0.6931472
    %v1010 = vmul.f32 -0.5, %v783
    %v1011 = vadd.f32 %v1010, 1.0
    %v1012 = vmul.f32 %v1011, %v783
    %v1013 = vand.u32 2147483647, %v783
    %vm1014 = vcmp.lt.f32.partialorder %v1013, 0.0004427343
    %v1015 = vsel %vm1014, %v1012, %v1009
    %v1016 = vadd.f32 %v784, 1.0
    %v1017 = vlog2.pop %v1016
    %v1018 = vmul.f32 %v1017, 0.6931472
    %v1019 = vmul.f32 -0.5, %v784
    %v1020 = vadd.f32 %v1019, 1.0
    %v1021 = vmul.f32 %v1020, %v784
    %v1022 = vand.u32 2147483647, %v784
    %vm1023 = vcmp.lt.f32.partialorder %v1022, 0.0004427343
    %v1024 = vsel %vm1023, %v1021, %v1018
    %v1025 = vadd.f32 %v785, 1.0
    %v1026 = vlog2.pop %v1025
    %v1027 = vmul.f32 %v1026, 0.6931472
    %v1028 = vmul.f32 -0.5, %v785
    %v1029 = vadd.f32 %v1028, 1.0
    %v1030 = vmul.f32 %v1029, %v785
    %v1031 = vand.u32 2147483647, %v785
    %vm1032 = vcmp.lt.f32.partialorder %v1031, 0.0004427343
    %v1033 = vsel %vm1032, %v1030, %v1027
    %v1034 = vadd.f32 %v786, 1.0
    %v1035 = vlog2.pop %v1034
    %v1036 = vmul.f32 %v1035, 0.6931472
    %v1037 = vmul.f32 -0.5, %v786
    %v1038 = vadd.f32 %v1037, 1.0
    %v1039 = vmul.f32 %v1038, %v786
    %v1040 = vand.u32 2147483647, %v786
    %vm1041 = vcmp.lt.f32.partialorder %v1040, 0.0004427343
    %v1042 = vsel %vm1041, %v1039, %v1036
    %v1043 = vadd.f32 %v787, 1.0
    %v1044 = vlog2.pop %v1043
    %v1045 = vmul.f32 %v1044, 0.6931472
    %v1046 = vmul.f32 -0.5, %v787
    %v1047 = vadd.f32 %v1046, 1.0
    %v1048 = vmul.f32 %v1047, %v787
    %v1049 = vand.u32 2147483647, %v787
    %vm1050 = vcmp.lt.f32.partialorder %v1049, 0.0004427343
    %v1051 = vsel %vm1050, %v1048, %v1045
    %v1052 = vadd.f32 %v788, 1.0
    %v1053 = vlog2.pop %v1052
    %v1054 = vmul.f32 %v1053, 0.6931472
    %v1055 = vmul.f32 -0.5, %v788
    %v1056 = vadd.f32 %v1055, 1.0
    %v1057 = vmul.f32 %v1056, %v788
    %v1058 = vand.u32 2147483647, %v788
    %vm1059 = vcmp.lt.f32.partialorder %v1058, 0.0004427343
    %v1060 = vsel %vm1059, %v1057, %v1054
    %v1061 = vadd.f32 %v789, 1.0
    %v1062 = vlog2.pop %v1061
    %v1063 = vmul.f32 %v1062, 0.6931472
    %v1064 = vmul.f32 -0.5, %v789
    %v1065 = vadd.f32 %v1064, 1.0
    %v1066 = vmul.f32 %v1065, %v789
    %v1067 = vand.u32 2147483647, %v789
    %vm1068 = vcmp.lt.f32.partialorder %v1067, 0.0004427343
    %v1069 = vsel %vm1068, %v1066, %v1063
    %v1070 = vadd.f32 %v790, 1.0
    %v1071 = vlog2.pop %v1070
    %v1072 = vmul.f32 %v1071, 0.6931472
    %v1073 = vmul.f32 -0.5, %v790
    %v1074 = vadd.f32 %v1073, 1.0
    %v1075 = vmul.f32 %v1074, %v790
    %v1076 = vand.u32 2147483647, %v790
    %vm1077 = vcmp.lt.f32.partialorder %v1076, 0.0004427343
    %v1078 = vsel %vm1077, %v1075, %v1072
    %v1079 = vsub.f32 %v479, %v799
    %v1080 = vsub.f32 %v488, %v808
    %v1081 = vsub.f32 %v497, %v817
    %v1082 = vsub.f32 %v506, %v826
    %v1083 = vsub.f32 %v515, %v835
    %v1084 = vsub.f32 %v524, %v844
    %v1085 = vsub.f32 %v533, %v853
    %v1086 = vsub.f32 %v542, %v862
    %v1087 = vsub.f32 %v551, %v871
    %v1088 = vsub.f32 %v560, %v880
    %v1089 = vsub.f32 %v569, %v889
    %v1090 = vsub.f32 %v578, %v898
    %v1091 = vsub.f32 %v587, %v907
    %v1092 = vsub.f32 %v596, %v916
    %v1093 = vsub.f32 %v605, %v925
    %v1094 = vsub.f32 %v614, %v934
    %v1095 = vsub.f32 %v623, %v943
    %v1096 = vsub.f32 %v632, %v952
    %v1097 = vsub.f32 %v641, %v961
    %v1098 = vsub.f32 %v650, %v970
    %v1099 = vsub.f32 %v659, %v979
    %v1100 = vsub.f32 %v668, %v988
    %v1101 = vsub.f32 %v677, %v997
    %v1102 = vsub.f32 %v686, %v1006
    %v1103 = vsub.f32 %v695, %v1015
    %v1104 = vsub.f32 %v704, %v1024
    %v1105 = vsub.f32 %v713, %v1033
    %v1106 = vsub.f32 %v722, %v1042
    %v1107 = vsub.f32 %v731, %v1051
    %v1108 = vsub.f32 %v740, %v1060
    %v1109 = vsub.f32 %v749, %v1069
    %v1110 = vsub.f32 %v758, %v1078
    %v1111 = vmul.f32 %v1079, 0.5
    %v1112 = vmul.f32 %v1080, 0.5
    %v1113 = vmul.f32 %v1081, 0.5
    %v1114 = vmul.f32 %v1082, 0.5
    %v1115 = vmul.f32 %v1083, 0.5
    %v1116 = vmul.f32 %v1084, 0.5
    %v1117 = vmul.f32 %v1085, 0.5
    %v1118 = vmul.f32 %v1086, 0.5
    %v1119 = vmul.f32 %v1087, 0.5
    %v1120 = vmul.f32 %v1088, 0.5
    %v1121 = vmul.f32 %v1089, 0.5
    %v1122 = vmul.f32 %v1090, 0.5
    %v1123 = vmul.f32 %v1091, 0.5
    %v1124 = vmul.f32 %v1092, 0.5
    %v1125 = vmul.f32 %v1093, 0.5
    %v1126 = vmul.f32 %v1094, 0.5
    %v1127 = vmul.f32 %v1095, 0.5
    %v1128 = vmul.f32 %v1096, 0.5
    %v1129 = vmul.f32 %v1097, 0.5
    %v1130 = vmul.f32 %v1098, 0.5
    %v1131 = vmul.f32 %v1099, 0.5
    %v1132 = vmul.f32 %v1100, 0.5
    %v1133 = vmul.f32 %v1101, 0.5
    %v1134 = vmul.f32 %v1102, 0.5
    %v1135 = vmul.f32 %v1103, 0.5
    %v1136 = vmul.f32 %v1104, 0.5
    %v1137 = vmul.f32 %v1105, 0.5
    %v1138 = vmul.f32 %v1106, 0.5
    %v1139 = vmul.f32 %v1107, 0.5
    %v1140 = vmul.f32 %v1108, 0.5
    %v1141 = vmul.f32 %v1109, 0.5
    %v1142 = vmul.f32 %v1110, 0.5
    %v1143 = vrcp.pop %v375
    %v1144 = vrcp.pop %v376
    %v1145 = vrcp.pop %v377
    %v1146 = vrcp.pop %v378
    %v1147 = vrcp.pop %v379
    %v1148 = vrcp.pop %v380
    %v1149 = vrcp.pop %v381
    %v1150 = vrcp.pop %v382
    %v1151 = vrcp.pop %v383
    %v1152 = vrcp.pop %v384
    %v1153 = vrcp.pop %v385
    %v1154 = vrcp.pop %v386
    %v1155 = vrcp.pop %v387
    %v1156 = vrcp.pop %v388
    %v1157 = vrcp.pop %v389
    %v1158 = vrcp.pop %v390
    %v1159 = vrcp.pop %v391
    %v1160 = vrcp.pop %v392
    %v1161 = vrcp.pop %v393
    %v1162 = vrcp.pop %v394
    %v1163 = vrcp.pop %v395
    %v1164 = vrcp.pop %v396
    %v1165 = vrcp.pop %v397
    %v1166 = vrcp.pop %v398
    %v1167 = vrcp.pop %v399
    %v1168 = vrcp.pop %v400
    %v1169 = vrcp.pop %v401
    %v1170 = vrcp.pop %v402
    %v1171 = vrcp.pop %v403
    %v1172 = vrcp.pop %v404
    %v1173 = vrcp.pop %v405
    %v1174 = vrcp.pop %v406
    %v1175 = vmul.f32 %v1111, %v1143
    %v1176 = vmul.f32 %v1112, %v1144
    %v1177 = vmul.f32 %v1113, %v1145
    %v1178 = vmul.f32 %v1114, %v1146
    %v1179 = vmul.f32 %v1115, %v1147
    %v1180 = vmul.f32 %v1116, %v1148
    %v1181 = vmul.f32 %v1117, %v1149
    %v1182 = vmul.f32 %v1118, %v1150
    %v1183 = vmul.f32 %v1119, %v1151
    %v1184 = vmul.f32 %v1120, %v1152
    %v1185 = vmul.f32 %v1121, %v1153
    %v1186 = vmul.f32 %v1122, %v1154
    %v1187 = vmul.f32 %v1123, %v1155
    %v1188 = vmul.f32 %v1124, %v1156
    %v1189 = vmul.f32 %v1125, %v1157
    %v1190 = vmul.f32 %v1126, %v1158
    %v1191 = vmul.f32 %v1127, %v1159
    %v1192 = vmul.f32 %v1128, %v1160
    %v1193 = vmul.f32 %v1129, %v1161
    %v1194 = vmul.f32 %v1130, %v1162
    %v1195 = vmul.f32 %v1131, %v1163
    %v1196 = vmul.f32 %v1132, %v1164
    %v1197 = vmul.f32 %v1133, %v1165
    %v1198 = vmul.f32 %v1134, %v1166
    %v1199 = vmul.f32 %v1135, %v1167
    %v1200 = vmul.f32 %v1136, %v1168
    %v1201 = vmul.f32 %v1137, %v1169
    %v1202 = vmul.f32 %v1138, %v1170
    %v1203 = vmul.f32 %v1139, %v1171
    %v1204 = vmul.f32 %v1140, %v1172
    %v1205 = vmul.f32 %v1141, %v1173
    %v1206 = vmul.f32 %v1142, %v1174
    %v1207 = vmul.f32 %v23, %v1175
    %v1208 = vmul.f32 %v24, %v1176
    %v1209 = vmul.f32 %v25, %v1177
    %v1210 = vmul.f32 %v26, %v1178
    %v1211 = vmul.f32 %v27, %v1179
    %v1212 = vmul.f32 %v28, %v1180
    %v1213 = vmul.f32 %v29, %v1181
    %v1214 = vmul.f32 %v30, %v1182
    %v1215 = vmul.f32 %v31, %v1183
    %v1216 = vmul.f32 %v32, %v1184
    %v1217 = vmul.f32 %v33, %v1185
    %v1218 = vmul.f32 %v34, %v1186
    %v1219 = vmul.f32 %v35, %v1187
    %v1220 = vmul.f32 %v36, %v1188
    %v1221 = vmul.f32 %v37, %v1189
    %v1222 = vmul.f32 %v38, %v1190
    %v1223 = vmul.f32 %v39, %v1191
    %v1224 = vmul.f32 %v40, %v1192
    %v1225 = vmul.f32 %v41, %v1193
    %v1226 = vmul.f32 %v42, %v1194
    %v1227 = vmul.f32 %v43, %v1195
    %v1228 = vmul.f32 %v44, %v1196
    %v1229 = vmul.f32 %v45, %v1197
    %v1230 = vmul.f32 %v46, %v1198
    %v1231 = vmul.f32 %v47, %v1199
    %v1232 = vmul.f32 %v48, %v1200
    %v1233 = vmul.f32 %v49, %v1201
    %v1234 = vmul.f32 %v50, %v1202
    %v1235 = vmul.f32 %v51, %v1203
    %v1236 = vmul.f32 %v52, %v1204
    %v1237 = vmul.f32 %v53, %v1205
    %v1238 = vmul.f32 %v54, %v1206
    %v1239 = vpack.c.bf16 %v1208, %v1207
    %v1240 = vpack.c.bf16 %v1210, %v1209
    %v1241 = vpack.c.bf16 %v1212, %v1211
    %v1242 = vpack.c.bf16 %v1214, %v1213
    %v1243 = vpack.c.bf16 %v1216, %v1215
    %v1244 = vpack.c.bf16 %v1218, %v1217
    %v1245 = vpack.c.bf16 %v1220, %v1219
    %v1246 = vpack.c.bf16 %v1222, %v1221
    %v1247 = vpack.c.bf16 %v1224, %v1223
    %v1248 = vpack.c.bf16 %v1226, %v1225
    %v1249 = vpack.c.bf16 %v1228, %v1227
    %v1250 = vpack.c.bf16 %v1230, %v1229
    %v1251 = vpack.c.bf16 %v1232, %v1231
    %v1252 = vpack.c.bf16 %v1234, %v1233
    %v1253 = vpack.c.bf16 %v1236, %v1235
    %v1254 = vpack.c.bf16 %v1238, %v1237
    %v1271 = vunpack.c.l.b16 %v1239
    %v1272 = vunpack.c.h.b16 %v1239
    %v1273 = vunpack.c.l.b16 %v1240
    %v1274 = vunpack.c.h.b16 %v1240
    %v1275 = vunpack.c.l.b16 %v1241
    %v1276 = vunpack.c.h.b16 %v1241
    %v1277 = vunpack.c.l.b16 %v1242
    %v1278 = vunpack.c.h.b16 %v1242
    %v1279 = vunpack.c.l.b16 %v1243
    %v1280 = vunpack.c.h.b16 %v1243
    %v1281 = vunpack.c.l.b16 %v1244
    %v1282 = vunpack.c.h.b16 %v1244
    %v1283 = vunpack.c.l.b16 %v1245
    %v1284 = vunpack.c.h.b16 %v1245
    %v1285 = vunpack.c.l.b16 %v1246
    %v1286 = vunpack.c.h.b16 %v1246
    %v1287 = vunpack.c.l.b16 %v1247
    %v1288 = vunpack.c.h.b16 %v1247
    %v1289 = vunpack.c.l.b16 %v1248
    %v1290 = vunpack.c.h.b16 %v1248
    %v1291 = vunpack.c.l.b16 %v1249
    %v1292 = vunpack.c.h.b16 %v1249
    %v1293 = vunpack.c.l.b16 %v1250
    %v1294 = vunpack.c.h.b16 %v1250
    %v1295 = vunpack.c.l.b16 %v1251
    %v1296 = vunpack.c.h.b16 %v1251
    %v1297 = vunpack.c.l.b16 %v1252
    %v1298 = vunpack.c.h.b16 %v1252
    %v1299 = vunpack.c.l.b16 %v1253
    %v1300 = vunpack.c.h.b16 %v1253
    %v1301 = vunpack.c.l.b16 %v1254
    %v1302 = vunpack.c.h.b16 %v1254
    %v1303 = vpack.c.b16 %v1271, %v1271
    %v1304 = vpack.c.b16 %v1272, %v1272
    %v1305 = vpack.c.b16 %v1273, %v1273
    %v1306 = vpack.c.b16 %v1274, %v1274
    %v1307 = vpack.c.b16 %v1275, %v1275
    %v1308 = vpack.c.b16 %v1276, %v1276
    %v1309 = vpack.c.b16 %v1277, %v1277
    %v1310 = vpack.c.b16 %v1278, %v1278
    %v1311 = vpack.c.b16 %v1279, %v1279
    %v1312 = vpack.c.b16 %v1280, %v1280
    %v1313 = vpack.c.b16 %v1281, %v1281
    %v1314 = vpack.c.b16 %v1282, %v1282
    %v1315 = vpack.c.b16 %v1283, %v1283
    %v1316 = vpack.c.b16 %v1284, %v1284
    %v1317 = vpack.c.b16 %v1285, %v1285
    %v1318 = vpack.c.b16 %v1286, %v1286
    %v1319 = vpack.c.b16 %v1287, %v1287
    %v1320 = vpack.c.b16 %v1288, %v1288
    %v1321 = vpack.c.b16 %v1289, %v1289
    %v1322 = vpack.c.b16 %v1290, %v1290
    %v1323 = vpack.c.b16 %v1291, %v1291
    %v1324 = vpack.c.b16 %v1292, %v1292
    %v1325 = vpack.c.b16 %v1293, %v1293
    %v1326 = vpack.c.b16 %v1294, %v1294
    %v1327 = vpack.c.b16 %v1295, %v1295
    %v1328 = vpack.c.b16 %v1296, %v1296
    %v1329 = vpack.c.b16 %v1297, %v1297
    %v1330 = vpack.c.b16 %v1298, %v1298
    %v1331 = vpack.c.b16 %v1299, %v1299
    %v1332 = vpack.c.b16 %v1300, %v1300
    %v1333 = vpack.c.b16 %v1301, %v1301
    %v1334 = vpack.c.b16 %v1302, %v1302
    %1367 = vst [vmem:[#allocation5] sm:$0xf] %v1303
    %1368 = vst [vmem:[#allocation5 + $0x4] sm:$0xf] %v1304
    %1369 = vst [vmem:[#allocation5 + $0x8] sm:$0xf] %v1305
    %1370 = vst [vmem:[#allocation5 + $0xc] sm:$0xf] %v1306
    %1371 = vst [vmem:[#allocation5 + $0x10] sm:$0xf] %v1307
    %1372 = vst [vmem:[#allocation5 + $0x14] sm:$0xf] %v1308
    %1373 = vst [vmem:[#allocation5 + $0x18] sm:$0xf] %v1309
    %1374 = vst [vmem:[#allocation5 + $0x1c] sm:$0xf] %v1310
    %1375 = vst [vmem:[#allocation5 + $0x20] sm:$0xf] %v1311
    %1376 = vst [vmem:[#allocation5 + $0x24] sm:$0xf] %v1312
    %1377 = vst [vmem:[#allocation5 + $0x28] sm:$0xf] %v1313
    %1378 = vst [vmem:[#allocation5 + $0x2c] sm:$0xf] %v1314
    %1379 = vst [vmem:[#allocation5 + $0x30] sm:$0xf] %v1315
    %1380 = vst [vmem:[#allocation5 + $0x34] sm:$0xf] %v1316
    %1381 = vst [vmem:[#allocation5 + $0x38] sm:$0xf] %v1317
    %1382 = vst [vmem:[#allocation5 + $0x3c] sm:$0xf] %v1318
    %1383 = vst [vmem:[#allocation5 + $0x40] sm:$0xf] %v1319
    %1384 = vst [vmem:[#allocation5 + $0x44] sm:$0xf] %v1320
    %1385 = vst [vmem:[#allocation5 + $0x48] sm:$0xf] %v1321
    %1386 = vst [vmem:[#allocation5 + $0x4c] sm:$0xf] %v1322
    %1387 = vst [vmem:[#allocation5 + $0x50] sm:$0xf] %v1323
    %1388 = vst [vmem:[#allocation5 + $0x54] sm:$0xf] %v1324
    %1389 = vst [vmem:[#allocation5 + $0x58] sm:$0xf] %v1325
    %1390 = vst [vmem:[#allocation5 + $0x5c] sm:$0xf] %v1326
    %1391 = vst [vmem:[#allocation5 + $0x60] sm:$0xf] %v1327
    %1392 = vst [vmem:[#allocation5 + $0x64] sm:$0xf] %v1328
    %1393 = vst [vmem:[#allocation5 + $0x68] sm:$0xf] %v1329
    %1394 = vst [vmem:[#allocation5 + $0x6c] sm:$0xf] %v1330
    %1395 = vst [vmem:[#allocation5 + $0x70] sm:$0xf] %v1331
    %1396 = vst [vmem:[#allocation5 + $0x74] sm:$0xf] %v1332
    %1397 = vst [vmem:[#allocation5 + $0x78] sm:$0xf] %v1333
    %1398 = vst [vmem:[#allocation5 + $0x7c] sm:$0xf] %v1334
    // Predicated region
    $region10: #{tpu_custom_call.1} parent=1 // pred_check
      _
    $region11: #{tpu_custom_call.1} parent=1 // pred_check_branch
      %1400 = sbr.rel (0) target = $region13
    $region12: #{tpu_custom_call.1} parent=1 // pred_region
      %s1402 = ssub.s32 2048, 2048
      %1403 = vsyncadd [#allocation4], %s1402
      %s1404 = sshll.u32 [#allocation5], 4
      %s1405 = int_to_ptr.vmem [resolvable:$true] %s1404
      %1410 = dma.vmem_to_hbm [thread:$0]  %s1405, 2048, %s1, [#allocation4], 64, 64, 4
    $region13: #{tpu_custom_call.1} parent=1 // pred_fallthru
      _
    // Predicated region
    $region14: #{tpu_custom_call.1} parent=1 // pred_check
      _
    $region15: #{tpu_custom_call.1} parent=1 // pred_check_branch
      %1412 = sbr.rel (0) target = $region17
    $region16: #{tpu_custom_call.1} parent=1 // pred_region
      %1413 = dma.done [#allocation4], 2048
    $region17: #{tpu_custom_call.1} parent=1 // pred_fallthru
      _
    %1414 = vsyncpa [#allocation3], 1
    %1415 = vsyncpa [#allocation4], 1

</llo_original>
